<compile_context>
chip_gen: v7x
topology: tpu7x:2x2x1
jax: 0.10.0
libtpu: 0.0.40
codegen_flags: <defaults>
</compile_context>

<pallas_src>
import math
import functools

import jax
import jax.numpy as jnp
from jax.experimental import pallas as pl
from jax.experimental.pallas import tpu as pltpu


# ---------------------------------------------------------------------------
# Buffer setup (glue, plain JAX) — mirrors PositionalEncoding.__init__
# ---------------------------------------------------------------------------
def make_pos_enc(d_model: int, max_seq_len: int = 512):
    position = jnp.arange(0, max_seq_len, dtype=jnp.float32)[:, None]            # (S, 1)
    div_term = jnp.exp(
        jnp.arange(0, d_model, 2, dtype=jnp.float32) * (-math.log(10000.0) / d_model)
    )                                                                             # (D/2,)
    angles = position * div_term                                                  # (S, D/2)
    pe = jnp.zeros((max_seq_len, d_model), dtype=jnp.float32)
    pe = pe.at[:, 0::2].set(jnp.sin(angles))
    pe = pe.at[:, 1::2].set(jnp.cos(angles))
    return pe                                                                     # f32 (S, D)


# ---------------------------------------------------------------------------
# Pallas kernels
# ---------------------------------------------------------------------------
def _pe_add_kernel_eval(x_ref, pe_ref, o_ref):
    # eval-mode dropout is identity: out = x + pos_enc (pe broadcast over batch)
    y = x_ref[...].astype(jnp.float32) + pe_ref[...][None, :, :]
    o_ref[...] = y.astype(o_ref.dtype)


def _hash_u32(x):
    # splitmix32 finalizer (uint32, wraps mod 2^32) — single round is enough
    # avalanche; keeps the train path HBM-bound on v7x.
    x = x ^ (x >> 16)
    x = x * jnp.uint32(0x7FEB352D)
    x = x ^ (x >> 15)
    x = x * jnp.uint32(0x846CA68B)
    x = x ^ (x >> 16)
    return x


def _pe_add_kernel_train(seed_ref, x_ref, pe_ref, o_ref, *, p: float,
                         rows_total: int, batched: bool):
    # inverted dropout: keep w.p. (1-p), scale kept by 1/(1-p).
    # Counter-based hash keyed on (seed, batch, global_row, col) in the working
    # layout — reproducible regardless of row tiling.
    nb, tsb, cols = x_ref.shape                                        # static
    y = x_ref[...].astype(jnp.float32) + pe_ref[...][None, :, :]       # (nb, tsb, C)

    shape = (nb, tsb, cols)
    b_idx = jax.lax.broadcasted_iota(jnp.int32, shape, 0).astype(jnp.uint32)
    r_idx = jax.lax.broadcasted_iota(jnp.int32, shape, 1).astype(jnp.uint32)
    c_idx = jax.lax.broadcasted_iota(jnp.int32, shape, 2).astype(jnp.uint32)
    if not batched:                                   # 2-D fallback grid: batch on axis 1
        b_idx = b_idx + pl.program_id(1).astype(jnp.uint32)
    r_idx = r_idx + (pl.program_id(0) * tsb).astype(jnp.uint32)        # global row

    lin = (b_idx * jnp.uint32(rows_total) + r_idx) * jnp.uint32(cols) + c_idx
    seed = seed_ref[0].astype(jnp.uint32) * jnp.uint32(0x9E3779B9)
    bits = _hash_u32(lin ^ seed)                      # one finalizer round (review)

    # Compare on 24 bits (exact in int32); |effective p - p| <= 2^-24.
    thr24 = min(int(round(p * float(1 << 24))), 1 << 24)
    keep = (bits >> 8).astype(jnp.int32) >= jnp.int32(thr24)

    scale = jnp.float32(0.0 if p >= 1.0 else 1.0 / (1.0 - p))
    o_ref[...] = jnp.where(keep, y * scale, jnp.float32(0.0)).astype(o_ref.dtype)


# ---------------------------------------------------------------------------
# Planning helpers
# ---------------------------------------------------------------------------
def _vmem_plan():
    """(per-stream slab target bytes, explicit scoped-VMEM limit) per TPU gen."""
    target, limit = 2 << 20, 32 << 20                 # safe on v5e / v6e / v7x
    try:
        info = pltpu.get_tpu_info()
        vmem = getattr(info, "vmem_capacity_bytes", None)
        if vmem is not None and vmem >= (128 << 20):  # v5e/v6e: afford 4 MiB slabs
            target, limit = 4 << 20, 48 << 20
    except Exception:
        pass
    return target, limit


def _plan_tiles(rows: int, cols: int, B: int, itemsize: int, target_bytes: int):
    """Pick the row tile TS, padded row count, and whether batch folds into the block."""
    folded_row_bytes = B * cols * itemsize
    fold = 8 * folded_row_bytes <= target_bytes       # min tile with batch folded fits
    per_row = folded_row_bytes if fold else cols * itemsize
    ts = max(8, (target_bytes // max(1, per_row)) // 8 * 8)
    if ts >= rows:
        return rows, rows, fold                       # one full-extent row block (fits budget)
    if rows % 8 == 0:
        t = ts
        while rows % t != 0:
            t -= 8
        return t, rows, fold
    # rows not a multiple of 8 and too large for one block: pad to a multiple of ts
    rows_p = ((rows + ts - 1) // ts) * ts
    return ts, rows_p, fold


# ---------------------------------------------------------------------------
# Wrapper
# ---------------------------------------------------------------------------
def positional_encoding_forward(x, pos_enc, *, training: bool = False,
                                p: float = 0.1, seed: int = 0):
    """x: (B, S, D). pos_enc: (max_seq_len, D) float32. Returns (B, S, D) in x.dtype."""
    B, S, D = x.shape
    assert S <= pos_enc.shape[0], "sequence length exceeds max_seq_len"
    assert B * S * D < (1 << 32), "dropout counter would wrap mod 2^32"
    pe = pos_enc[:S].astype(jnp.float32)              # pe kept f32 (like the torch buffer)
    itemsize = jnp.dtype(x.dtype).itemsize

    # Lane-dense working layout: (B, rows, cols) with cols a multiple of 128
    # whenever the elementwise reshape is exact.
    if D % 128 == 0 or (S * D) % 128 != 0:
        rows, cols = S, D
        x_w, pe_w = x, pe
    else:
        rows, cols = (S * D) // 128, 128
        x_w = x.reshape(B, rows, cols)
        pe_w = pe.reshape(rows, cols)

    target_bytes, vmem_limit = _vmem_plan()
    ts, rows_p, fold = _plan_tiles(rows, cols, B, itemsize, target_bytes)
    if rows_p != rows:                                # rare: pad rows to a tile multiple
        x_w = jnp.pad(x_w, ((0, 0), (0, rows_p - rows), (0, 0)))
        pe_w = jnp.pad(pe_w, ((0, rows_p - rows), (0, 0)))
    n_r = rows_p // ts

    out_shape = jax.ShapeDtypeStruct((B, rows_p, cols), x.dtype)
    train = training and p > 0.0

    if fold:
        grid = (n_r,)
        dims = ("parallel",)
        nb = B
        if train:
            x_map = lambda r, seed: (0, r, 0)
            pe_map = lambda r, seed: (r, 0)
        else:
            x_map = lambda r: (0, r, 0)
            pe_map = lambda r: (r, 0)
    else:
        grid = (n_r, B)
        dims = ("parallel", "parallel")
        nb = 1
        if train:
            x_map = lambda r, b, seed: (b, r, 0)
            pe_map = lambda r, b, seed: (r, 0)
        else:
            x_map = lambda r, b: (b, r, 0)
            pe_map = lambda r, b: (r, 0)

    x_spec = pl.BlockSpec((nb, ts, cols), x_map)
    pe_spec = pl.BlockSpec((ts, cols), pe_map)
    o_spec = pl.BlockSpec((nb, ts, cols), x_map)
    cparams = pltpu.CompilerParams(dimension_semantics=dims,
                                   vmem_limit_bytes=vmem_limit)

    if not train:
        out = pl.pallas_call(
            _pe_add_kernel_eval,
            out_shape=out_shape,
            grid_spec=pl.GridSpec(grid=grid, in_specs=[x_spec, pe_spec],
                                  out_specs=o_spec),
            compiler_params=cparams,
        )(x_w, pe_w)
    else:
        kernel = functools.partial(_pe_add_kernel_train, p=float(p),
                                   rows_total=rows_p, batched=fold)
        seed_arr = jnp.asarray([seed], dtype=jnp.int32)
        out = pl.pallas_call(
            kernel,
            out_shape=out_shape,
            grid_spec=pltpu.PrefetchScalarGridSpec(
                num_scalar_prefetch=1,                # seed lands in SMEM
                grid=grid,
                in_specs=[x_spec, pe_spec],
                out_specs=o_spec,
            ),
            compiler_params=cparams,
        )(seed_arr, x_w, pe_w)

    if rows_p != rows:
        out = out[:, :rows, :]
    return out.reshape(B, S, D)


# ---------------------------------------------------------------------------
# Demo / self-check
# ---------------------------------------------------------------------------
if __name__ == "__main__":
    B, S, D = 2, 8, 32
    MAX_SEQ_LEN = 64

    key = jax.random.PRNGKey(0)
    x = jax.random.normal(key, (B, S, D), dtype=jnp.float32)

    pos_enc = make_pos_enc(D, max_seq_len=MAX_SEQ_LEN)
    ref = x + pos_enc[:S][None, :, :]

    # Eval mode (dropout == identity): must match pure-JAX reference.
    out_eval = jax.block_until_ready(positional_encoding_forward(x, pos_enc, training=False))
    assert out_eval.shape == (B, S, D)
    assert jnp.allclose(out_eval, ref, atol=1e-6, rtol=1e-6), "eval-mode mismatch"

    # Training mode (dropout p=0.1).  RNG stream differs from PyTorch's;
    # semantics (Bernoulli keep-mask + 1/(1-p) scaling) match nn.Dropout.
    p = 0.1
    out_train = jax.block_until_ready(
        positional_encoding_forward(x, pos_enc, training=True, p=p, seed=42))
    assert out_train.shape == (B, S, D)
    nz = out_train != 0
    assert jnp.allclose(jnp.where(nz, out_train, 0.0),
                        jnp.where(nz, ref / (1.0 - p), 0.0),
                        atol=1e-5, rtol=1e-5), "train-mode kept-value mismatch"
    drop_frac = 1.0 - jnp.mean(nz.astype(jnp.float32))
    assert drop_frac < 0.5, "dropout rate implausibly high"

    print("KERNEL_OK")
</pallas_src>

<mosaic_0001>
module attributes {stable_mosaic.version = 11 : i64} {
  func.func @_pe_add_kernel_eval(%arg0: i32, %arg1: memref<2x2x128xf32, #tpu.memory_space<vmem>>, %arg2: memref<2x128xf32, #tpu.memory_space<vmem>>, %arg3: memref<2x2x128xf32, #tpu.memory_space<vmem>>) attributes {dimension_semantics = [#tpu.dimension_semantics<parallel>], iteration_bounds = array<i64: 1>, scalar_prefetch = 0 : i64, scratch_operands = 0 : i64, tpu.core_type = #tpu.core_type<tc>, window_params = [{transform_indices = @transform_0, window_bounds = array<i64: 2, 2, 128>}, {transform_indices = @transform_1, window_bounds = array<i64: 2, 128>}, {transform_indices = @transform_2, window_bounds = array<i64: 2, 2, 128>}]} {
    %c0 = arith.constant 0 : index
    %c0_0 = arith.constant 0 : index
    %c0_1 = arith.constant 0 : index
    %0 = vector.load %arg1[%c0, %c0_0, %c0_1] : memref<2x2x128xf32, #tpu.memory_space<vmem>>, vector<2x2x128xf32>
    %c0_2 = arith.constant 0 : index
    %c0_3 = arith.constant 0 : index
    %1 = vector.load %arg2[%c0_2, %c0_3] : memref<2x128xf32, #tpu.memory_space<vmem>>, vector<2x128xf32>
    %2 = vector.shape_cast %1 : vector<2x128xf32> to vector<1x2x128xf32>
    %3 = vector.broadcast %2 : vector<1x2x128xf32> to vector<2x2x128xf32>
    %4 = arith.addf %0, %3 : vector<2x2x128xf32>
    %c0_4 = arith.constant 0 : index
    %c0_5 = arith.constant 0 : index
    %c0_6 = arith.constant 0 : index
    %5 = vector.load %arg3[%c0_4, %c0_5, %c0_6] : memref<2x2x128xf32, #tpu.memory_space<vmem>>, vector<2x2x128xf32>
    tpu.vector_store %arg3[%c0_4, %c0_5, %c0_6], %4 {strides = array<i32>} : memref<2x2x128xf32, #tpu.memory_space<vmem>>, vector<2x2x128xf32>,
    return
  }
  func.func @transform_0(%arg0: i32) -> (i32, i32, i32) {
    %c0_i32 = arith.constant 0 : i32
    %c0_i32_0 = arith.constant 0 : i32
    %c0_i32_1 = arith.constant 0 : i32
    return %c0_i32, %arg0, %c0_i32_0 : i32, i32, i32
  }
  func.func @transform_1(%arg0: i32) -> (i32, i32) {
    %c0_i32 = arith.constant 0 : i32
    %c0_i32_0 = arith.constant 0 : i32
    return %arg0, %c0_i32 : i32, i32
  }
  func.func @transform_2(%arg0: i32) -> (i32, i32, i32) {
    %c0_i32 = arith.constant 0 : i32
    %c0_i32_0 = arith.constant 0 : i32
    %c0_i32_1 = arith.constant 0 : i32
    return %c0_i32, %arg0, %c0_i32_0 : i32, i32, i32
  }
}

</mosaic_0001>

<llo_original>
// kernel: tpu_custom_call.1
$region0: #{tpu_custom_call.1}
  #allocation0 [shape = 'u32[]', space=smem, size = 0x4, offset = 0x4, fixed_abs, tag = 'smem constant byte address 0x4 - core index']
  #allocation1 [shape = 'u32[144,128]{1,0:T(1,128)}', space=vmem, size = 0x12000, scoped, tag = 'internal scratch']
  %s0 = inlined_call_operand.hbm [shape: f32[2,2,128], index: 0, kind: input, shape index: {}]
  %s1 = inlined_call_operand.vmem [shape: f32[2,128], index: 1, kind: input, shape index: {}]
  %s2 = inlined_call_operand.hbm [shape: f32[2,2,128], index: 2, kind: output, shape index: {}]
  %s3 = sld [smem:[#allocation0]]
  $region22: #{tpu_custom_call.1} parent=0
    _
  %s5 = ssub.s32 1, %s3
  %s6 = scalar_select 0, %s5, %s3
  $region1: #{tpu_custom_call.1} parent=0
    #allocation2 [shape = 'u8[2048]{0}', space=vmem, size = 0x800, scoped, tag = 'input window, operand 0, single buffered']
    #allocation3 [shape = 's32[1]{0}', space=sflag, size = 0x4, scoped, tag = 'scoped memory for tpu_custom_call.1']
    #allocation4 [shape = 's32[1]{0}', space=sflag, size = 0x4, scoped, tag = 'scoped memory for tpu_custom_call.1']
    #allocation5 [shape = 'u8[2048]{0}', space=vmem, size = 0x800, scoped, tag = 'output window, operand 0, single buffered']
    %7 = vsyncpa [#allocation3], 0
    %8 = vsyncpa [#allocation4], 0
    // Predicated region
    $region2: #{tpu_custom_call.1} parent=1 // pred_check
      _
    $region3: #{tpu_custom_call.1} parent=1 // pred_check_branch
      %10 = sbr.rel (0) target = $region5
    $region4: #{tpu_custom_call.1} parent=1 // pred_region
      %s12 = ssub.s32 64, 64
      %13 = vsyncadd [#allocation3], %s12
      %s14 = sshll.u32 [#allocation2], 4
      %s15 = int_to_ptr.vmem [resolvable:$true] %s14
      %20 = dma.hbm_to_vmem [thread:$0]  %s0, 64, %s15, [#allocation3], 32, 32, 2
    $region5: #{tpu_custom_call.1} parent=1 // pred_fallthru
      _
    // Predicated region
    $region6: #{tpu_custom_call.1} parent=1 // pred_check
      _
    $region7: #{tpu_custom_call.1} parent=1 // pred_check_branch
      %22 = sbr.rel (0) target = $region9
    $region8: #{tpu_custom_call.1} parent=1 // pred_region
      _
    $region9: #{tpu_custom_call.1} parent=1 // pred_fallthru
      _
    // Predicated region
    $region10: #{tpu_custom_call.1} parent=1 // pred_check
      _
    $region11: #{tpu_custom_call.1} parent=1 // pred_check_branch
      %24 = sbr.rel (0) target = $region13
    $region12: #{tpu_custom_call.1} parent=1 // pred_region
      %25 = dma.done [#allocation3], 64
    $region13: #{tpu_custom_call.1} parent=1 // pred_fallthru
      _
    %v26 = vld [vmem:[#allocation2] sm:$0x3]
    %v27 = vld [vmem:[#allocation2 + $0x2] sm:$0x3]
    %v28 = vld [vmem:[%s1] sm:$0x3]
    %v29 = vadd.f32 %v26, %v28
    %v30 = vadd.f32 %v27, %v28
    %31 = vst [vmem:[#allocation5] sm:$0x3] %v29
    %32 = vst [vmem:[#allocation5 + $0x2] sm:$0x3] %v30
    // Predicated region
    $region14: #{tpu_custom_call.1} parent=1 // pred_check
      _
    $region15: #{tpu_custom_call.1} parent=1 // pred_check_branch
      %34 = sbr.rel (0) target = $region17
    $region16: #{tpu_custom_call.1} parent=1 // pred_region
      %s36 = ssub.s32 64, 64
      %37 = vsyncadd [#allocation4], %s36
      %s38 = sshll.u32 [#allocation5], 4
      %s39 = int_to_ptr.vmem [resolvable:$true] %s38
      %44 = dma.vmem_to_hbm [thread:$0]  %s39, 64, %s2, [#allocation4], 32, 32, 2
    $region17: #{tpu_custom_call.1} parent=1 // pred_fallthru
      _
    // Predicated region
    $region18: #{tpu_custom_call.1} parent=1 // pred_check
      _
    $region19: #{tpu_custom_call.1} parent=1 // pred_check_branch
      %46 = sbr.rel (0) target = $region21
    $region20: #{tpu_custom_call.1} parent=1 // pred_region
      %47 = dma.done [#allocation4], 64
    $region21: #{tpu_custom_call.1} parent=1 // pred_fallthru
      _
    %48 = vsyncpa [#allocation3], 1
    %49 = vsyncpa [#allocation4], 1

</llo_original>
